<compile_context>
chip_gen: v7x
topology: tpu7x:2x2x1
jax: 0.10.0
libtpu: 0.0.40
codegen_flags: <defaults>
</compile_context>

<pallas_src>
import math

import jax
import jax.numpy as jnp
from jax.experimental import pallas as pl
from jax.experimental.pallas import tpu as pltpu


# ----------------------------------------------------------------------------
# Generation-dependent sizing (tile budget per output buffer, Pallas crossover).
# ----------------------------------------------------------------------------
_GEN_PARAMS_CACHE = []


def _generation_params():
    """Returns (per-buffer output tile budget in bytes, min elements for Pallas)."""
    if _GEN_PARAMS_CACHE:
        return _GEN_PARAMS_CACHE[0]

    vmem_bytes = None
    try:
        info = pltpu.get_tpu_info()
        vmem_bytes = getattr(info, "vmem_capacity_bytes", None)
    except Exception:
        vmem_bytes = None

    kind = ""
    try:
        kind = jax.devices()[0].device_kind.lower()
    except Exception:
        kind = ""

    small_vmem = vmem_bytes is not None and vmem_bytes <= 64 * 1024 * 1024
    looks_v7x = small_vmem or ("v7" in kind) or ("tpu7" in kind)

    if looks_v7x:
        # 64 MiB physical VMEM, 3.2 TB/s HBM: 2 x 8 MiB double buffer, higher
        # Pallas-vs-XLA crossover because HBM drains tiny outputs in ~1 us.
        params = (8 * 1024 * 1024, 1024 * 1024)
    else:
        # v5e / v6e: 128 MiB physical VMEM. 2 x 16 MiB buffers; we also pass an
        # explicit vmem_limit_bytes so v5e's 16 MiB scoped default is not a trap.
        params = (16 * 1024 * 1024, 512 * 1024)

    _GEN_PARAMS_CACHE.append(params)
    return params


# ----------------------------------------------------------------------------
# Pallas kernel: write-only broadcast of a resident (1, W) row down TR rows.
# ----------------------------------------------------------------------------
def _broadcast_row_kernel(row_ref, out_ref):
    # row_ref: (1, W) — same block index every grid step -> stays resident, no re-DMA.
    # out_ref: (TR, W) — write-only output tile (pure store; HBM-store-bound).
    out_ref[...] = jnp.broadcast_to(row_ref[...], out_ref.shape)


def _pick_rows_per_tile(num_rows, width, itemsize, budget_bytes):
    """Rows per output tile: multiple of 8 sublanes, bounded by the VMEM budget,
    split so the grid has >= 2 steps when possible (megacore / pipelining)."""
    if num_rows <= 8:
        return num_rows                       # block == full array extent is allowed
    row_bytes = width * itemsize
    max_rows = max(8, (budget_bytes // row_bytes) // 8 * 8)
    tr = min(num_rows, max_rows)
    tr = max(8, (tr // 8) * 8)
    if tr >= num_rows and num_rows >= 16:
        # One tile would swallow everything: split in ~half so the "parallel"
        # grid axis can shard across both TensorCores on v7x.
        half = (((num_rows + 1) // 2) + 7) // 8 * 8
        if half < num_rows:
            tr = half
    return tr


def _broadcast_rows_pallas(row, num_rows, budget_bytes):
    """row: (1, W). Returns (num_rows, W) = row broadcast down the rows, via Pallas."""
    _, w = row.shape
    dtype = row.dtype
    itemsize = jnp.dtype(dtype).itemsize

    tr = _pick_rows_per_tile(num_rows, w, itemsize, budget_bytes)
    grid = (pl.cdiv(num_rows, tr),)

    tile_bytes = tr * w * itemsize
    row_vmem_bytes = 8 * w * itemsize         # (1, W) row pads to 8 sublanes in VMEM
    # Explicit scoped-VMEM limit: 2x double-buffered output tile + resident input
    # + headroom. Keeps v5e (16 MiB scoped default) from silently shrinking tiles.
    vmem_limit = int(max(2 * tile_bytes + 2 * row_vmem_bytes + (2 << 20), 16 << 20))

    return pl.pallas_call(
        _broadcast_row_kernel,
        out_shape=jax.ShapeDtypeStruct((num_rows, w), dtype),
        grid=grid,
        in_specs=[pl.BlockSpec((1, w), lambda i: (0, 0))],
        out_specs=pl.BlockSpec((tr, w), lambda i: (i, 0)),
        compiler_params=pltpu.CompilerParams(
            dimension_semantics=("parallel",),
            vmem_limit_bytes=vmem_limit),
    )(row)


# ----------------------------------------------------------------------------
# DiagGaussian forward.
# ----------------------------------------------------------------------------
def diag_gaussian_std(bias, batch, dtype, *, force_pallas=False):
    """std = exp(broadcast(bias)) with shape (batch, action_size)."""
    a = bias.shape[-1]
    # exp in float32 (matches torch's fp32 parameter path), cast once afterwards.
    std_row = jnp.exp(bias.astype(jnp.float32)).astype(dtype).reshape(1, a)
    total = batch * a
    itemsize = jnp.dtype(dtype).itemsize
    budget_bytes, min_elems = _generation_params()

    if not force_pallas and total < min_elems:
        # Small outputs: XLA fuses the broadcast into the consumer for free;
        # a pallas_call's fixed custom-call cost would dominate.
        return jnp.broadcast_to(std_row, (batch, a))

    # Generalized lane-dense slab: whenever total % 128 == 0, the flattened std is
    # a repetition of a W = lcm(A, 128) lane-dense pattern row, so we can emit the
    # whole output as a (total // W, W) slab with unmasked 128-lane stores and
    # reshape back to (B, A) in the wrapper (metadata-only, contiguous).
    g = math.gcd(a, 128)
    w = a * (128 // g)                        # lcm(a, 128)
    if total % 128 == 0 and total % w == 0 and 8 * w * itemsize <= budget_bytes:
        reps = w // a
        dense_row = std_row if reps == 1 else jnp.tile(std_row, (1, reps))  # (1, W), XLA, once
        rows = total // w
        out = _broadcast_rows_pallas(dense_row, rows, budget_bytes)
        return out.reshape(batch, a)

    # Fallback: (TR, A) row tiles (A is the full lane extent; masked stores if
    # A is not a multiple of 128 — only reachable when total % 128 != 0).
    return _broadcast_rows_pallas(std_row, batch, budget_bytes)


def diag_gaussian_forward(x, bias, *, force_pallas=False):
    """Returns (mean, std) parameterizing the DiagGaussian output distribution."""
    b, _ = x.shape
    std = diag_gaussian_std(bias, b, x.dtype, force_pallas=force_pallas)
    return x, std          # mean == x: identity pass-through, zero extra HBM traffic


class Normal:
    """Thin JAX analogue of torch.distributions.Independent(Normal(mean, std), 1)."""
    # TODO(synk): sampling / rsample of torch.distributions is not reproduced here;
    # only mean/std/mode/log_prob are provided.

    def __init__(self, mean, std, event_dim=1):
        self.mean = mean
        self.std = std
        self.event_dim = event_dim

    def mode(self):
        return self.mean

    def log_prob(self, value):
        var = self.std * self.std
        lp = (-0.5 * ((value - self.mean) ** 2) / var
              - jnp.log(self.std) - 0.5 * jnp.log(2.0 * jnp.pi))
        if self.event_dim:
            lp = lp.sum(axis=tuple(range(-self.event_dim, 0)))
        return lp


class DiagGaussian:
    """JAX/Pallas port of the PyTorch DiagGaussian module."""

    def __init__(self, action_size, dtype=jnp.float32):
        # nn.Parameter(torch.zeros(action_size).unsqueeze(1)) -> deterministic zeros.
        self.bias = jnp.zeros((action_size,), dtype=dtype)

    def __call__(self, x, *, force_pallas=False):
        mean, std = diag_gaussian_forward(x, self.bias, force_pallas=force_pallas)
        return Normal(mean, std, event_dim=1)


if __name__ == "__main__":
    key = jax.random.PRNGKey(0)
    batch, action_size = 2, 4
    x = jax.random.normal(key, (batch, action_size), dtype=jnp.float32)

    module = DiagGaussian(action_size)

    # 1) Default path at the tiny demo shape (fast fused XLA path).
    dist = module(x)
    jax.block_until_ready((dist.mean, dist.std))
    assert dist.mean.shape == (batch, action_size)
    assert dist.std.shape == (batch, action_size)
    assert jnp.allclose(dist.mean, x)                          # mean == x
    assert jnp.allclose(dist.std, jnp.ones_like(x))            # std == exp(0) == 1

    # 2) Pallas kernel forced at the tiny shape (general (TR, A) path, grid=(1,)).
    mean_p, std_p = diag_gaussian_forward(x, module.bias, force_pallas=True)
    jax.block_until_ready((mean_p, std_p))
    assert jnp.allclose(mean_p, x)
    assert jnp.allclose(std_p, jnp.ones_like(x))

    # 3) Lane-dense slab path with A | 128, non-trivial bias, 2-step grid.
    b2 = 1024
    kx2, kb2 = jax.random.split(jax.random.PRNGKey(1))
    x2 = jax.random.normal(kx2, (b2, action_size), dtype=jnp.float32)
    bias2 = 0.1 * jax.random.normal(kb2, (action_size,), dtype=jnp.float32)
    mean2, std2 = diag_gaussian_forward(x2, bias2, force_pallas=True)
    jax.block_until_ready((mean2, std2))
    ref2 = jnp.broadcast_to(jnp.exp(bias2), (b2, action_size))
    assert jnp.allclose(mean2, x2)
    assert jnp.allclose(std2, ref2, rtol=1e-6, atol=1e-6)

    # 4) Generalized lane-dense (lcm pattern) path: A = 6 does not divide 128,
    #    but B*A % 128 == 0 -> W = lcm(6, 128) = 384-lane unmasked stores.
    b3, a3 = 4096, 6
    kx3, kb3 = jax.random.split(jax.random.PRNGKey(2))
    x3 = jax.random.normal(kx3, (b3, a3), dtype=jnp.float32)
    bias3 = 0.05 * jax.random.normal(kb3, (a3,), dtype=jnp.float32)
    mean3, std3 = diag_gaussian_forward(x3, bias3, force_pallas=True)
    jax.block_until_ready((mean3, std3))
    ref3 = jnp.broadcast_to(jnp.exp(bias3), (b3, a3))
    assert jnp.allclose(mean3, x3)
    assert jnp.allclose(std3, ref3, rtol=1e-6, atol=1e-6)

    # 5) General fallback path (B*A not a multiple of 128): masked-store tiles.
    b4, a4 = 100, 5
    kx4, kb4 = jax.random.split(jax.random.PRNGKey(3))
    x4 = jax.random.normal(kx4, (b4, a4), dtype=jnp.float32)
    bias4 = 0.2 * jax.random.normal(kb4, (a4,), dtype=jnp.float32)
    mean4, std4 = diag_gaussian_forward(x4, bias4, force_pallas=True)
    jax.block_until_ready((mean4, std4))
    ref4 = jnp.broadcast_to(jnp.exp(bias4), (b4, a4))
    assert jnp.allclose(mean4, x4)
    assert jnp.allclose(std4, ref4, rtol=1e-6, atol=1e-6)

    print("KERNEL_OK")
</pallas_src>

<mosaic_0001>
module attributes {stable_mosaic.version = 11 : i64} {
  func.func @_broadcast_row_kernel(%arg0: i32, %arg1: memref<1x4xf32, #tpu.memory_space<vmem>>, %arg2: memref<2x4xf32, #tpu.memory_space<vmem>>) attributes {dimension_semantics = [#tpu.dimension_semantics<parallel>], iteration_bounds = array<i64: 1>, scalar_prefetch = 0 : i64, scratch_operands = 0 : i64, tpu.core_type = #tpu.core_type<tc>, window_params = [{pipeline_mode = #tpu.pipeline_mode<synchronous>, transform_indices = @transform_0, window_bounds = array<i64: 1, 4>}, {transform_indices = @transform_1, window_bounds = array<i64: 2, 4>}]} {
    %c0 = arith.constant 0 : index
    %c0_0 = arith.constant 0 : index
    %0 = vector.load %arg1[%c0, %c0_0] : memref<1x4xf32, #tpu.memory_space<vmem>>, vector<1x4xf32>
    %1 = vector.shape_cast %0 : vector<1x4xf32> to vector<1x4xf32>
    %2 = vector.broadcast %1 : vector<1x4xf32> to vector<2x4xf32>
    %c0_1 = arith.constant 0 : index
    %c0_2 = arith.constant 0 : index
    %3 = vector.load %arg2[%c0_1, %c0_2] : memref<2x4xf32, #tpu.memory_space<vmem>>, vector<2x4xf32>
    tpu.vector_store %arg2[%c0_1, %c0_2], %2 {strides = array<i32>} : memref<2x4xf32, #tpu.memory_space<vmem>>, vector<2x4xf32>,
    return
  }
  func.func @transform_0(%arg0: i32) -> (i32, i32) {
    %c0_i32 = arith.constant 0 : i32
    %c0_i32_0 = arith.constant 0 : i32
    %c0_i32_1 = arith.constant 0 : i32
    return %c0_i32, %c0_i32_0 : i32, i32
  }
  func.func @transform_1(%arg0: i32) -> (i32, i32) {
    %c0_i32 = arith.constant 0 : i32
    %c0_i32_0 = arith.constant 0 : i32
    return %arg0, %c0_i32 : i32, i32
  }
}

</mosaic_0001>

<llo_original>
// kernel: tpu_custom_call.1
$region0: #{tpu_custom_call.1}
  #allocation0 [shape = 'u32[]', space=smem, size = 0x4, offset = 0x4, fixed_abs, tag = 'smem constant byte address 0x4 - core index']
  #allocation1 [shape = 'u32[144,128]{1,0:T(1,128)}', space=vmem, size = 0x12000, scoped, tag = 'internal scratch']
  %s0 = inlined_call_operand.hbm [shape: f32[1,4], index: 0, kind: input, shape index: {}]
  %s1 = inlined_call_operand.hbm [shape: f32[2,4], index: 1, kind: output, shape index: {}]
  %s2 = sld [smem:[#allocation0]]
  $region18: #{tpu_custom_call.1} parent=0
    _
  %s4 = ssub.s32 1, %s2
  %s5 = scalar_select 0, %s4, %s2
  $region1: #{tpu_custom_call.1} parent=0
    #allocation2 [shape = 'u8[512]{0}', space=vmem, size = 0x400, scoped, tag = 'input window, operand 0, single buffered']
    #allocation3 [shape = 's32[1]{0}', space=sflag, size = 0x4, scoped, tag = 'scoped memory for tpu_custom_call.1']
    #allocation4 [shape = 's32[1]{0}', space=sflag, size = 0x4, scoped, tag = 'scoped memory for tpu_custom_call.1']
    #allocation5 [shape = 'u8[1024]{0}', space=vmem, size = 0x400, scoped, tag = 'output window, operand 0, single buffered']
    %6 = vsyncpa [#allocation3], 0
    %7 = vsyncpa [#allocation4], 0
    // Predicated region
    $region2: #{tpu_custom_call.1} parent=1 // pred_check
      _
    $region3: #{tpu_custom_call.1} parent=1 // pred_check_branch
      %9 = sbr.rel (0) target = $region5
    $region4: #{tpu_custom_call.1} parent=1 // pred_region
      %s11 = ssub.s32 16, 16
      %12 = vsyncadd [#allocation3], %s11
      %s14 = sshll.u32 [#allocation2], 4
      %s15 = int_to_ptr.vmem [resolvable:$true] %s14
      %17 = dma.hbm_to_vmem [thread:$0]  %s0, 16, %s15, [#allocation3]
    $region5: #{tpu_custom_call.1} parent=1 // pred_fallthru
      _
    // Predicated region
    $region6: #{tpu_custom_call.1} parent=1 // pred_check
      _
    $region7: #{tpu_custom_call.1} parent=1 // pred_check_branch
      %19 = sbr.rel (0) target = $region9
    $region8: #{tpu_custom_call.1} parent=1 // pred_region
      %20 = dma.done [#allocation3], 16
    $region9: #{tpu_custom_call.1} parent=1 // pred_fallthru
      _
    %v21 = vld [vmem:[#allocation2] sm:$0x1]
    %v23 = vlaneseq
    %v24 = vshrl.u32 %v23, 7
    %v25 = vsub.s32 0, %v24
    %v26 = vrot.slane %v21, %v25
    %vm28 = vcmask 25600
    %29 = vst.msk [vmem:[#allocation5] sm:$0x3] %vm28, %v26
    // Predicated region
    $region10: #{tpu_custom_call.1} parent=1 // pred_check
      _
    $region11: #{tpu_custom_call.1} parent=1 // pred_check_branch
      %31 = sbr.rel (0) target = $region13
    $region12: #{tpu_custom_call.1} parent=1 // pred_region
      %s33 = ssub.s32 32, 32
      %34 = vsyncadd [#allocation4], %s33
      %s36 = sshll.u32 [#allocation5], 4
      %s37 = int_to_ptr.vmem [resolvable:$true] %s36
      %39 = dma.vmem_to_hbm [thread:$0]  %s37, 32, %s1, [#allocation4]
    $region13: #{tpu_custom_call.1} parent=1 // pred_fallthru
      _
    // Predicated region
    $region14: #{tpu_custom_call.1} parent=1 // pred_check
      _
    $region15: #{tpu_custom_call.1} parent=1 // pred_check_branch
      %41 = sbr.rel (0) target = $region17
    $region16: #{tpu_custom_call.1} parent=1 // pred_region
      %42 = dma.done [#allocation4], 32
    $region17: #{tpu_custom_call.1} parent=1 // pred_fallthru
      _
    %43 = vsyncpa [#allocation3], 1
    %44 = vsyncpa [#allocation4], 1

</llo_original>
